<compile_context>
chip_gen: v6e
topology: v6e:2x2x1
jax: 0.10.0
libtpu: 0.0.40
codegen_flags: <defaults>
</compile_context>

<pallas_src>
import jax
import jax.numpy as jnp
import numpy as np
from jax.experimental import pallas as pl
from jax.experimental.pallas import tpu as pltpu


def _round_up(v, m):
    return (v + m - 1) // m * m


def _sublanes(itemsize):
    # sublane packing: 8 rows/vreg for 4-byte, 16 for 2-byte, 32 for 1-byte
    return 8 * max(1, 4 // int(itemsize))


def _vmem_capacity_bytes():
    try:
        info = pltpu.get_tpu_info()
        cap = int(getattr(info, "vmem_capacity_bytes", 0))
        if cap > 0:
            return cap
    except Exception:
        pass
    return 64 << 20  # conservative fallback (v7x per-TensorCore capacity)


def _gconv_last_kernel(w_ref, z_ref, b_ref, o_ref):
    # w_ref: (Bt, Tm, N*J)   W row tile, native dtype (cast below if needed)
    # z_ref: (Bt, N*J, F2p)  Z = (x ⊗ I_J) @ fcW^T, compute dtype
    # b_ref: (1, F2p)        fc bias (f32)
    # o_ref: (Bt, Tm, F2p)   output tile
    bt, tile_m, _ = w_ref.shape
    f2p = o_ref.shape[-1]
    cdt = z_ref.dtype
    # Hoist the bias broadcast out of the per-sample loop (JAX doesn't CSE it).
    bias = jnp.broadcast_to(b_ref[...], (tile_m, f2p))
    # Bt is a small trace-time constant (<= 4): bounded unroll; only one
    # (Tm, F2p) f32 accumulator is live per iteration since Z is precomputed.
    for b in range(bt):
        wv = w_ref[b]
        if wv.dtype != cdt:
            wv = wv.astype(cdt)  # in-kernel cast: no extra HBM pass over W
        acc = jnp.dot(wv, z_ref[b], preferred_element_type=jnp.float32)
        o_ref[b] = (acc + bias).astype(o_ref.dtype)


def gconv_last(W, x, fc_weight, fc_bias, *, block_bs=None, tile_m=None,
               compute_dtype=None, pad_output_lanes=None):
    """Pallas TPU implementation of Gconv_last.forward.

    W:         (bs, N, N, J)
    x:         (bs, N, F0)
    fc_weight: (F2, J*F0)   (PyTorch nn.Linear layout)
    fc_bias:   (F2,)
    returns (W, out) with out: (bs, N, F2)
    """
    bs, N, N2, J = W.shape
    assert N2 == N
    F0 = x.shape[-1]
    F2 = fc_weight.shape[0]
    assert fc_weight.shape[1] == J * F0
    NJ = N * J

    out_dtype = x.dtype
    cdt = jnp.dtype(jnp.bfloat16) if compute_dtype is None else jnp.dtype(compute_dtype)

    w_is = jnp.dtype(W.dtype).itemsize
    c_is = jnp.dtype(cdt).itemsize
    o_is = jnp.dtype(out_dtype).itemsize

    # Lane-pad the fc/output axis only when the W stream dominates the padded
    # writeback (large graphs); small graphs use the unpadded full-dim block.
    if F2 % 128 == 0:
        F2p = F2
    else:
        if pad_output_lanes is None:
            pad_output_lanes = NJ * w_is >= _round_up(F2, 128) * o_is
        F2p = _round_up(F2, 128) if pad_output_lanes else F2

    # Free row-major view: Wr[b, i, k*J + j] = W[b, i, k, j].  No dtype cast
    # here (that would be a full extra HBM pass over the dominant tensor).
    Wr = W.reshape(bs, N, NJ)

    # Z[b, k*J + j, c] = sum_f x[b, k, f] * fcW[c, j*F0 + f]  (tiny einsum on x)
    fcw_r = fc_weight.reshape(F2, J, F0)
    Z = jnp.einsum("bkf,cjf->bkjc", x.astype(cdt), fcw_r.astype(cdt),
                   preferred_element_type=jnp.float32)
    Z = Z.reshape(bs, NJ, F2).astype(cdt)
    bias_p = fc_bias.astype(jnp.float32)
    if F2p != F2:
        Z = jnp.pad(Z, ((0, 0), (0, 0), (0, F2p - F2)))
        bias_p = jnp.pad(bias_p, (0, F2p - F2))
    bias_p = bias_p.reshape(1, F2p)

    # ---- per-chip VMEM budgets & block selection ----
    vmem_cap = _vmem_capacity_bytes()
    cap_limit = int(vmem_cap * 0.8)       # headroom for compiler scratch/spills
    step_budget = cap_limit // 3          # double-buffered in/out + temporaries
    f2p_l = _round_up(F2p, 128)

    def _step_bytes(tm, bbs):
        w_blk = bbs * _round_up(tm, _sublanes(w_is)) * _round_up(NJ, 128) * w_is
        z_blk = bbs * _round_up(NJ, _sublanes(c_is)) * f2p_l * c_is
        o_blk = bbs * _round_up(tm, _sublanes(o_is)) * f2p_l * o_is
        tmp = bbs * _round_up(tm, 8) * f2p_l * 4      # f32 accumulators
        tmp += _round_up(tm, 8) * f2p_l * 4           # broadcast bias
        return w_blk, z_blk, o_blk, tmp

    if tile_m is None:
        if N <= 256 or N % 8 != 0:
            tile_m = N
        else:
            cands = [t for t in (256, 128, 64, 32, 16, 8) if N % t == 0]
            tile_m = N
            for t in cands:
                if sum(_step_bytes(t, 1)) <= step_budget:
                    tile_m = t
                    break
            else:
                if cands:
                    tile_m = cands[-1]
    assert N % tile_m == 0 and (tile_m % 8 == 0 or tile_m == N)

    if block_bs is None:
        block_bs = 1
        for cand in range(1, min(bs, 4) + 1):   # small bounded in-kernel unroll
            if bs % cand == 0 and sum(_step_bytes(tile_m, cand)) <= step_budget:
                block_bs = cand
    assert bs % block_bs == 0

    w_blk, z_blk, o_blk, tmp = _step_bytes(tile_m, block_bs)
    vmem_need = 2 * (w_blk + z_blk + o_blk) + tmp + 8 * f2p_l * 4
    vmem_limit = int(min(cap_limit, max(16 << 20, int(vmem_need * 1.3))))
    vmem_limit = int(min(max(vmem_limit, vmem_need), vmem_cap))

    grid = (bs // block_bs, N // tile_m)

    cost = pl.CostEstimate(
        flops=int(2 * bs * N * NJ * F2p),
        transcendentals=0,
        bytes_accessed=int(bs * N * NJ * w_is + bs * NJ * F2p * c_is
                           + bs * N * F2p * o_is + F2p * 4),
    )

    out_p = pl.pallas_call(
        _gconv_last_kernel,
        out_shape=jax.ShapeDtypeStruct((bs, N, F2p), out_dtype),
        grid_spec=pltpu.PrefetchScalarGridSpec(
            num_scalar_prefetch=0,
            grid=grid,
            in_specs=[
                pl.BlockSpec((block_bs, tile_m, NJ), lambda b, m: (b, m, 0)),
                pl.BlockSpec((block_bs, NJ, F2p), lambda b, m: (b, 0, 0)),
                pl.BlockSpec((1, F2p), lambda b, m: (0, 0)),
            ],
            out_specs=pl.BlockSpec((block_bs, tile_m, F2p), lambda b, m: (b, m, 0)),
        ),
        compiler_params=pltpu.CompilerParams(
            dimension_semantics=("parallel", "parallel"),
            vmem_limit_bytes=int(vmem_limit),
        ),
        cost_estimate=cost,
    )(Wr, Z, bias_p)

    out = out_p if F2p == F2 else out_p[:, :, :F2]   # drop lane padding if any
    return W, out


def _reference(W, x, fc_weight, fc_bias):
    # Pure-JAX reference mirroring gmul + nn.Linear.
    bs, N, _, J = W.shape
    F0 = x.shape[-1]
    y = jnp.einsum("bikj,bkf->bijf", W, x).reshape(bs, N, J * F0)
    return y @ fc_weight.T + fc_bias


if __name__ == "__main__":
    def make_inputs(key, bs, N, F0, J, F2):
        kW, kx, kw, kb = jax.random.split(key, 4)
        Wv = jax.random.normal(kW, (bs, N, N, J), dtype=jnp.float32)
        xv = jax.random.normal(kx, (bs, N, F0), dtype=jnp.float32)
        bound = 1.0 / np.sqrt(J * F0)  # nn.Linear-style U(-1/sqrt(fan_in), ...)
        fw = jax.random.uniform(kw, (F2, J * F0), minval=-bound, maxval=bound,
                                dtype=jnp.float32)
        fb = jax.random.uniform(kb, (F2,), minval=-bound, maxval=bound,
                                dtype=jnp.float32)
        return Wv, xv, fw, fb

    key = jax.random.PRNGKey(0)
    k1, k2 = jax.random.split(key)

    # feature_maps = [4, 8, 16], J = 2  ->  num_inputs = 8, num_outputs = 16
    bs, N, F0, J, F2 = 2, 8, 4, 2, 16
    W, x, fcw, fcb = make_inputs(k1, bs, N, F0, J, F2)
    ref = _reference(W, x, fcw, fcb)

    # f32 compute path: tight tolerance.
    f32_fn = jax.jit(lambda a, b, c, d: gconv_last(a, b, c, d,
                                                   compute_dtype=jnp.float32))
    W_out, out_f32 = f32_fn(W, x, fcw, fcb)
    jax.block_until_ready(out_f32)
    np.testing.assert_allclose(np.asarray(out_f32), np.asarray(ref),
                               rtol=1e-4, atol=1e-5)
    assert W_out.shape == W.shape and out_f32.shape == (bs, N, F2)

    # Default path: bf16 W/Z stream on the MXU, f32 accumulation.
    _, out_bf16 = jax.jit(gconv_last)(W, x, fcw, fcb)
    jax.block_until_ready(out_bf16)
    np.testing.assert_allclose(np.asarray(out_bf16), np.asarray(ref),
                               rtol=2e-2, atol=5e-2)

    # Larger graph: exercises the lane-padded output path + in-kernel W cast.
    bs2, N2, F02, J2, F22 = 2, 128, 4, 2, 16
    W2, x2, fcw2, fcb2 = make_inputs(k2, bs2, N2, F02, J2, F22)
    ref2 = _reference(W2, x2, fcw2, fcb2)
    _, out2 = jax.jit(gconv_last)(W2, x2, fcw2, fcb2)
    jax.block_until_ready(out2)
    np.testing.assert_allclose(np.asarray(out2), np.asarray(ref2),
                               rtol=3e-2, atol=3e-1)

    print("KERNEL_OK")
</pallas_src>

<mosaic_0001>
module attributes {stable_mosaic.version = 11 : i64} {
  func.func @_gconv_last_kernel(%arg0: i32, %arg1: i32, %arg2: memref<2x8x16xf32, #tpu.memory_space<vmem>>, %arg3: memref<2x16x16xf32, #tpu.memory_space<vmem>>, %arg4: memref<1x16xf32, #tpu.memory_space<vmem>>, %arg5: memref<2x8x16xf32, #tpu.memory_space<vmem>>) attributes {dimension_semantics = [#tpu.dimension_semantics<parallel>, #tpu.dimension_semantics<parallel>], iteration_bounds = array<i64: 1, 1>, scalar_prefetch = 0 : i64, scratch_operands = 0 : i64, tpu.core_type = #tpu.core_type<tc>, window_params = [{transform_indices = @transform_0, window_bounds = array<i64: 2, 8, 16>}, {transform_indices = @transform_1, window_bounds = array<i64: 2, 16, 16>}, {pipeline_mode = #tpu.pipeline_mode<synchronous>, transform_indices = @transform_2, window_bounds = array<i64: 1, 16>}, {transform_indices = @transform_3, window_bounds = array<i64: 2, 8, 16>}]} {
    %c0 = arith.constant 0 : index
    %c0_0 = arith.constant 0 : index
    %0 = vector.load %arg4[%c0, %c0_0] : memref<1x16xf32, #tpu.memory_space<vmem>>, vector<1x16xf32>
    %1 = vector.shape_cast %0 : vector<1x16xf32> to vector<1x16xf32>
    %2 = vector.broadcast %1 : vector<1x16xf32> to vector<8x16xf32>
    %c0_1 = arith.constant 0 : index
    %c0_2 = arith.constant 0 : index
    %c0_3 = arith.constant 0 : index
    %3 = vector.load %arg2[%c0_1, %c0_2, %c0_3] : memref<2x8x16xf32, #tpu.memory_space<vmem>>, vector<1x8x16xf32>
    %4 = vector.shape_cast %3 : vector<1x8x16xf32> to vector<8x16xf32>
    %c0_4 = arith.constant 0 : index
    %c0_5 = arith.constant 0 : index
    %c0_6 = arith.constant 0 : index
    %5 = vector.load %arg3[%c0_4, %c0_5, %c0_6] : memref<2x16x16xf32, #tpu.memory_space<vmem>>, vector<1x16x16xf32>
    %6 = vector.shape_cast %5 : vector<1x16x16xf32> to vector<16x16xf32>
    %cst = arith.constant dense<0.000000e+00> : vector<8x16xf32>
    %7 = tpu.matmul %4, %6, %cst {dimension_numbers = #tpu.dot_dimension_numbers<[1], [0], [0], [1], [0, 0, 1, 1], [], []>} : vector<8x16xf32>, vector<16x16xf32>, vector<8x16xf32> -> vector<8x16xf32>
    %8 = arith.addf %7, %2 : vector<8x16xf32>
    %c0_7 = arith.constant 0 : index
    %c0_8 = arith.constant 0 : index
    %c0_9 = arith.constant 0 : index
    %9 = vector.load %arg5[%c0_7, %c0_8, %c0_9] : memref<2x8x16xf32, #tpu.memory_space<vmem>>, vector<1x8x16xf32>
    %10 = vector.shape_cast %9 : vector<1x8x16xf32> to vector<8x16xf32>
    %11 = vector.shape_cast %8 : vector<8x16xf32> to vector<1x8x16xf32>
    tpu.vector_store %arg5[%c0_7, %c0_8, %c0_9], %11 {strides = array<i32>} : memref<2x8x16xf32, #tpu.memory_space<vmem>>, vector<1x8x16xf32>,
    %c1 = arith.constant 1 : index
    %c0_10 = arith.constant 0 : index
    %c0_11 = arith.constant 0 : index
    %12 = vector.load %arg2[%c1, %c0_10, %c0_11] : memref<2x8x16xf32, #tpu.memory_space<vmem>>, vector<1x8x16xf32>
    %13 = vector.shape_cast %12 : vector<1x8x16xf32> to vector<8x16xf32>
    %c1_12 = arith.constant 1 : index
    %c0_13 = arith.constant 0 : index
    %c0_14 = arith.constant 0 : index
    %14 = vector.load %arg3[%c1_12, %c0_13, %c0_14] : memref<2x16x16xf32, #tpu.memory_space<vmem>>, vector<1x16x16xf32>
    %15 = vector.shape_cast %14 : vector<1x16x16xf32> to vector<16x16xf32>
    %cst_15 = arith.constant dense<0.000000e+00> : vector<8x16xf32>
    %16 = tpu.matmul %13, %15, %cst_15 {dimension_numbers = #tpu.dot_dimension_numbers<[1], [0], [0], [1], [0, 0, 1, 1], [], []>} : vector<8x16xf32>, vector<16x16xf32>, vector<8x16xf32> -> vector<8x16xf32>
    %17 = arith.addf %16, %2 : vector<8x16xf32>
    %c1_16 = arith.constant 1 : index
    %c0_17 = arith.constant 0 : index
    %c0_18 = arith.constant 0 : index
    %18 = vector.load %arg5[%c1_16, %c0_17, %c0_18] : memref<2x8x16xf32, #tpu.memory_space<vmem>>, vector<1x8x16xf32>
    %19 = vector.shape_cast %18 : vector<1x8x16xf32> to vector<8x16xf32>
    %20 = vector.shape_cast %17 : vector<8x16xf32> to vector<1x8x16xf32>
    tpu.vector_store %arg5[%c1_16, %c0_17, %c0_18], %20 {strides = array<i32>} : memref<2x8x16xf32, #tpu.memory_space<vmem>>, vector<1x8x16xf32>,
    return
  }
  func.func @transform_0(%arg0: i32, %arg1: i32) -> (i32, i32, i32) {
    %c0_i32 = arith.constant 0 : i32
    %c0_i32_0 = arith.constant 0 : i32
    return %arg0, %arg1, %c0_i32 : i32, i32, i32
  }
  func.func @transform_1(%arg0: i32, %arg1: i32) -> (i32, i32, i32) {
    %c0_i32 = arith.constant 0 : i32
    %c0_i32_0 = arith.constant 0 : i32
    %c0_i32_1 = arith.constant 0 : i32
    return %arg0, %c0_i32, %c0_i32_0 : i32, i32, i32
  }
  func.func @transform_2(%arg0: i32, %arg1: i32) -> (i32, i32) {
    %c0_i32 = arith.constant 0 : i32
    %c0_i32_0 = arith.constant 0 : i32
    %c0_i32_1 = arith.constant 0 : i32
    return %c0_i32, %c0_i32_0 : i32, i32
  }
  func.func @transform_3(%arg0: i32, %arg1: i32) -> (i32, i32, i32) {
    %c0_i32 = arith.constant 0 : i32
    %c0_i32_0 = arith.constant 0 : i32
    return %arg0, %arg1, %c0_i32 : i32, i32, i32
  }
}

</mosaic_0001>

<llo_original>
// kernel: _lambda_.1
$region0: #{_lambda_.1}
  #allocation0 [shape = 'u32[]', space=smem, size = 0x4, offset = 0x4, fixed_abs, tag = 'smem constant byte address 0x4 - core index']
  #allocation1 [shape = 'u32[144,128]{1,0:T(1,128)}', space=vmem, size = 0x12000, scoped, tag = 'internal scratch']
  %s0 = inlined_call_operand.vmem [shape: f32[2,8,16], index: 0, kind: input, shape index: {}]
  %s1 = inlined_call_operand.vmem [shape: f32[2,16,16], index: 1, kind: input, shape index: {}]
  %s2 = inlined_call_operand.vmem [shape: f32[1,16], index: 2, kind: input, shape index: {}]
  %s3 = inlined_call_operand.hbm [shape: f32[2,8,16], index: 3, kind: output, shape index: {}]
  %s4 = sld [smem:[#allocation0]]
  $region22: #{_lambda_.1} parent=0
    _
  %s6 = ssub.s32 1, %s4
  %s7 = scalar_select 0, %s6, %s4
  $region1: #{_lambda_.1} parent=0
    #allocation2 [shape = 'u8[8192]{0}', space=vmem, size = 0x2000, scoped, tag = 'output window, operand 0, single buffered']
    #allocation3 [shape = 's32[1]{0}', space=sflag, size = 0x4, scoped, tag = 'scoped memory for _lambda_.1']
    %8 = vsyncpa [#allocation3], 0
    // Predicated region
    $region2: #{_lambda_.1} parent=1 // pred_check
      _
    $region3: #{_lambda_.1} parent=1 // pred_check_branch
      %10 = sbr.rel (0) target = $region5
    $region4: #{_lambda_.1} parent=1 // pred_region
      _
    $region5: #{_lambda_.1} parent=1 // pred_fallthru
      _
    // Predicated region
    $region6: #{_lambda_.1} parent=1 // pred_check
      _
    $region7: #{_lambda_.1} parent=1 // pred_check_branch
      %12 = sbr.rel (0) target = $region9
    $region8: #{_lambda_.1} parent=1 // pred_region
      _
    $region9: #{_lambda_.1} parent=1 // pred_fallthru
      _
    // Predicated region
    $region10: #{_lambda_.1} parent=1 // pred_check
      _
    $region11: #{_lambda_.1} parent=1 // pred_check_branch
      %14 = sbr.rel (0) target = $region13
    $region12: #{_lambda_.1} parent=1 // pred_region
      _
    $region13: #{_lambda_.1} parent=1 // pred_fallthru
      _
    %v15 = vld [vmem:[%s2] sm:$0x1]
    %v17 = vlaneseq
    %v18 = vshrl.u32 %v17, 7
    %v19 = vsub.s32 0, %v18
    %v20 = vrot.slane %v15, %v19
    %v22 = vld [vmem:[%s0] sm:$0xff]
    %v23 = vld [vmem:[%s1] sm:$0xff]
    %v24 = vld [vmem:[%s1 + $0x8] sm:$0xff]
    %vm25 = vcmask 130048
    %v27 = vsel %vm25, %v22, 0
    %29 = vmatprep.subr.mxu0 0.0
    %30 = vmatpush1.msra.mxu0 0.0
    %31 = vmatprep.subr.mxu0 0.0
    %32 = vmatpush1.msra.mxu0 0.0
    %33 = vmatprep.subr.mxu0 0.0
    %34 = vmatpush1.msra.mxu0 0.0
    %35 = vmatprep.subr.mxu0 0.0
    %36 = vmatpush1.msra.mxu0 0.0
    %37 = vmatprep.subr.mxu0 0.0
    %38 = vmatpush1.msra.mxu0 0.0
    %39 = vmatprep.subr.mxu0 0.0
    %40 = vmatpush1.msra.mxu0 0.0
    %41 = vmatprep.subr.mxu0 0.0
    %42 = vmatpush1.msra.mxu0 0.0
    %43 = vmatprep.subr.mxu0 0.0
    %44 = vmatpush1.msra.mxu0 0.0
    %45 = vmatprep.subr.mxu0 0.0
    %46 = vmatpush1.msra.mxu0 0.0
    %47 = vmatprep.subr.mxu0 0.0
    %48 = vmatpush1.msra.mxu0 0.0
    %49 = vmatprep.subr.mxu0 0.0
    %50 = vmatpush1.msra.mxu0 0.0
    %51 = vmatprep.subr.mxu0 0.0
    %52 = vmatpush1.msra.mxu0 0.0
    %53 = vmatprep.subr.mxu0 0.0
    %54 = vmatpush1.msra.mxu0 0.0
    %55 = vmatprep.subr.mxu0 0.0
    %56 = vmatpush1.msra.mxu0 0.0
    %57 = vmatprep.subr.mxu0 0.0
    %58 = vmatpush1.msra.mxu0 %v24
    %59 = vmatprep.subr.mxu0 0.0
    %60 = vmatpush1.msra.mxu0 %v23
    %61 = vmatprep.subr.mxu0 0.0
    %62 = vmatpush2.msra.mxu0 0.0
    %63 = vmatprep.subr.mxu0 0.0
    %64 = vmatpush2.msra.mxu0 0.0
    %65 = vmatprep.subr.mxu0 0.0
    %66 = vmatpush2.msra.mxu0 0.0
    %67 = vmatprep.subr.mxu0 0.0
    %68 = vmatpush2.msra.mxu0 0.0
    %69 = vmatprep.subr.mxu0 0.0
    %70 = vmatpush2.msra.mxu0 0.0
    %71 = vmatprep.subr.mxu0 0.0
    %72 = vmatpush2.msra.mxu0 0.0
    %73 = vmatprep.subr.mxu0 0.0
    %74 = vmatpush2.msra.mxu0 0.0
    %75 = vmatprep.subr.mxu0 0.0
    %76 = vmatpush2.msra.mxu0 0.0
    %77 = vmatprep.subr.mxu0 0.0
    %78 = vmatpush2.msra.mxu0 0.0
    %79 = vmatprep.subr.mxu0 0.0
    %80 = vmatpush2.msra.mxu0 0.0
    %81 = vmatprep.subr.mxu0 0.0
    %82 = vmatpush2.msra.mxu0 0.0
    %83 = vmatprep.subr.mxu0 0.0
    %84 = vmatpush2.msra.mxu0 0.0
    %85 = vmatprep.subr.mxu0 0.0
    %86 = vmatpush2.msra.mxu0 0.0
    %87 = vmatprep.subr.mxu0 0.0
    %88 = vmatpush2.msra.mxu0 0.0
    %89 = vmatprep.subr.mxu0 0.0
    %90 = vmatpush2.msra.mxu0 0.0
    %91 = vmatprep.subr.mxu0 0.0
    %92 = vmatpush2.msra.mxu0 0.0
    %93 = vmatprep.mubr.f32.mxu0 0.0
    %94 = vmatmul.mubr.f32.gmra.mxu0 %v27
    %v95 = vpop.f32.mrf.mxu0
    %v96 = vadd.f32 %v20, %v95
    %v97 = vpop.f32.mrf.mxu0
    %98 = vdwg.mxu0
    %99 = vst.msk [vmem:[#allocation2] sm:$0xff] %vm25, %v96
    %s100 = scalar_lea.vmem %s0, 8
    %v101 = vld [vmem:[%s100] sm:$0xff]
    %s102 = scalar_lea.vmem %s1, 16
    %v103 = vld [vmem:[%s102] sm:$0xff]
    %v104 = vld [vmem:[%s102 + $0x8] sm:$0xff]
    %v106 = vsel %vm25, %v101, 0
    %108 = vmatprep.subr.mxu0 0.0
    %109 = vmatpush1.msra.mxu0 0.0
    %110 = vmatprep.subr.mxu0 0.0
    %111 = vmatpush1.msra.mxu0 0.0
    %112 = vmatprep.subr.mxu0 0.0
    %113 = vmatpush1.msra.mxu0 0.0
    %114 = vmatprep.subr.mxu0 0.0
    %115 = vmatpush1.msra.mxu0 0.0
    %116 = vmatprep.subr.mxu0 0.0
    %117 = vmatpush1.msra.mxu0 0.0
    %118 = vmatprep.subr.mxu0 0.0
    %119 = vmatpush1.msra.mxu0 0.0
    %120 = vmatprep.subr.mxu0 0.0
    %121 = vmatpush1.msra.mxu0 0.0
    %122 = vmatprep.subr.mxu0 0.0
    %123 = vmatpush1.msra.mxu0 0.0
    %124 = vmatprep.subr.mxu0 0.0
    %125 = vmatpush1.msra.mxu0 0.0
    %126 = vmatprep.subr.mxu0 0.0
    %127 = vmatpush1.msra.mxu0 0.0
    %128 = vmatprep.subr.mxu0 0.0
    %129 = vmatpush1.msra.mxu0 0.0
    %130 = vmatprep.subr.mxu0 0.0
    %131 = vmatpush1.msra.mxu0 0.0
    %132 = vmatprep.subr.mxu0 0.0
    %133 = vmatpush1.msra.mxu0 0.0
    %134 = vmatprep.subr.mxu0 0.0
    %135 = vmatpush1.msra.mxu0 0.0
    %136 = vmatprep.subr.mxu0 0.0
    %137 = vmatpush1.msra.mxu0 %v104
    %138 = vmatprep.subr.mxu0 0.0
    %139 = vmatpush1.msra.mxu0 %v103
    %140 = vmatprep.subr.mxu0 0.0
    %141 = vmatpush2.msra.mxu0 0.0
    %142 = vmatprep.subr.mxu0 0.0
    %143 = vmatpush2.msra.mxu0 0.0
    %144 = vmatprep.subr.mxu0 0.0
    %145 = vmatpush2.msra.mxu0 0.0
    %146 = vmatprep.subr.mxu0 0.0
    %147 = vmatpush2.msra.mxu0 0.0
    %148 = vmatprep.subr.mxu0 0.0
    %149 = vmatpush2.msra.mxu0 0.0
    %150 = vmatprep.subr.mxu0 0.0
    %151 = vmatpush2.msra.mxu0 0.0
    %152 = vmatprep.subr.mxu0 0.0
    %153 = vmatpush2.msra.mxu0 0.0
    %154 = vmatprep.subr.mxu0 0.0
    %155 = vmatpush2.msra.mxu0 0.0
    %156 = vmatprep.subr.mxu0 0.0
    %157 = vmatpush2.msra.mxu0 0.0
    %158 = vmatprep.subr.mxu0 0.0
    %159 = vmatpush2.msra.mxu0 0.0
    %160 = vmatprep.subr.mxu0 0.0
    %161 = vmatpush2.msra.mxu0 0.0
    %162 = vmatprep.subr.mxu0 0.0
    %163 = vmatpush2.msra.mxu0 0.0
    %164 = vmatprep.subr.mxu0 0.0
    %165 = vmatpush2.msra.mxu0 0.0
    %166 = vmatprep.subr.mxu0 0.0
    %167 = vmatpush2.msra.mxu0 0.0
    %168 = vmatprep.subr.mxu0 0.0
    %169 = vmatpush2.msra.mxu0 0.0
    %170 = vmatprep.subr.mxu0 0.0
    %171 = vmatpush2.msra.mxu0 0.0
    %172 = vmatprep.mubr.f32.mxu0 0.0
    %173 = vmatmul.mubr.f32.gmra.mxu0 %v106
    %v174 = vpop.f32.mrf.mxu0
    %v175 = vadd.f32 %v20, %v174
    %v176 = vpop.f32.mrf.mxu0
    %177 = vdwg.mxu0
    %s178 = scalar_lea.vmem [#allocation2], 8
    %179 = vst.msk [vmem:[%s178] sm:$0xff] %vm25, %v175
    // Predicated region
    $region14: #{_lambda_.1} parent=1 // pred_check
      _
    $region15: #{_lambda_.1} parent=1 // pred_check_branch
      %181 = sbr.rel (0) target = $region17
    $region16: #{_lambda_.1} parent=1 // pred_region
      %s183 = ssub.s32 256, 256
      %184 = vsyncadd [#allocation3], %s183
      %s185 = sshll.u32 [#allocation2], 4
      %s186 = int_to_ptr.vmem [resolvable:$true] %s185
      %191 = dma.vmem_to_hbm [thread:$0]  %s186, 256, %s3, [#allocation3], 128, 128, 8
    $region17: #{_lambda_.1} parent=1 // pred_fallthru
      _
    // Predicated region
    $region18: #{_lambda_.1} parent=1 // pred_check
      _
    $region19: #{_lambda_.1} parent=1 // pred_check_branch
      %193 = sbr.rel (0) target = $region21
    $region20: #{_lambda_.1} parent=1 // pred_region
      %194 = dma.done [#allocation3], 256
    $region21: #{_lambda_.1} parent=1 // pred_fallthru
      _
    %195 = vsyncpa [#allocation3], 1

</llo_original>
